<compile_context>
chip_gen: v6e
topology: v6e:2x2x1
jax: 0.10.0
libtpu: 0.0.40
codegen_flags: <defaults>
</compile_context>

<pallas_src>
import jax
import jax.numpy as jnp
from jax.experimental import pallas as pl
from jax.experimental.pallas import tpu as pltpu


def _copy_kernel(z_ref, o_ref):
    # Dense 2-D (TILE_B, D) tile -> full-vreg, unmasked stores.
    o_ref[...] = z_ref[...]


def dummy_mapping(z: jax.Array, c=None, **kwargs) -> jax.Array:
    """Equivalent of DummyMapping.forward(z, c): returns z.unsqueeze(1).

    Fast path note: the truly optimal implementation is `z[:, None, :]`
    (metadata-only).  The Pallas kernel below is kept as a fusion shell and
    follows the dense-2-D-output / tiled-over-B recipe from the perf review.
    """
    B, D = z.shape

    # Batch tile: large enough to amortize the ~0.35 us per-step overhead and
    # approach the HBM roofline on big inputs, small enough that the
    # double-buffered input + output tiles stay well under every
    # generation's scoped-VMEM default (512 * D * 4 B * 4 bufs ~= 1 MiB at
    # D=128 f32).
    TILE_B = min(B, 512)
    grid = (pl.cdiv(B, TILE_B),)

    out2d = pl.pallas_call(
        _copy_kernel,
        out_shape=jax.ShapeDtypeStruct((B, D), z.dtype),
        grid_spec=pl.GridSpec(
            grid=grid,
            in_specs=[pl.BlockSpec((TILE_B, D), lambda i: (i, 0))],
            out_specs=pl.BlockSpec((TILE_B, D), lambda i: (i, 0)),
        ),
        compiler_params=pltpu.CompilerParams(
            # Batch tiles are independent -> shard across TCs on v7x.
            dimension_semantics=("parallel",),
        ),
    )(z)

    # Free, metadata-only reshape in the wrapper: (B, D) -> (B, 1, D).
    return out2d[:, None, :]


if __name__ == "__main__":
    key = jax.random.PRNGKey(0)
    # Small latent batch consistent with a GAN mapping-network input.
    B, D = 2, 128
    z = jax.random.normal(key, (B, D), dtype=jnp.float32)

    out = dummy_mapping(z)
    out = jax.block_until_ready(out)

    # Reference check against plain-JAX unsqueeze.
    ref = z[:, None, :]
    assert out.shape == (B, 1, D), out.shape
    assert jnp.array_equal(out, ref), "mismatch vs reference unsqueeze"

    print("KERNEL_OK")
</pallas_src>

<mosaic_0001>
module attributes {stable_mosaic.version = 11 : i64} {
  func.func @_copy_kernel(%arg0: i32, %arg1: memref<2x128xf32, #tpu.memory_space<vmem>>, %arg2: memref<2x128xf32, #tpu.memory_space<vmem>>) attributes {dimension_semantics = [#tpu.dimension_semantics<parallel>], iteration_bounds = array<i64: 1>, scalar_prefetch = 0 : i64, scratch_operands = 0 : i64, tpu.core_type = #tpu.core_type<tc>, window_params = [{transform_indices = @transform_0, window_bounds = array<i64: 2, 128>}, {transform_indices = @transform_1, window_bounds = array<i64: 2, 128>}]} {
    %c0 = arith.constant 0 : index
    %c0_0 = arith.constant 0 : index
    %0 = vector.load %arg1[%c0, %c0_0] : memref<2x128xf32, #tpu.memory_space<vmem>>, vector<2x128xf32>
    %c0_1 = arith.constant 0 : index
    %c0_2 = arith.constant 0 : index
    %1 = vector.load %arg2[%c0_1, %c0_2] : memref<2x128xf32, #tpu.memory_space<vmem>>, vector<2x128xf32>
    tpu.vector_store %arg2[%c0_1, %c0_2], %0 {strides = array<i32>} : memref<2x128xf32, #tpu.memory_space<vmem>>, vector<2x128xf32>,
    return
  }
  func.func @transform_0(%arg0: i32) -> (i32, i32) {
    %c0_i32 = arith.constant 0 : i32
    %c0_i32_0 = arith.constant 0 : i32
    return %arg0, %c0_i32 : i32, i32
  }
  func.func @transform_1(%arg0: i32) -> (i32, i32) {
    %c0_i32 = arith.constant 0 : i32
    %c0_i32_0 = arith.constant 0 : i32
    return %arg0, %c0_i32 : i32, i32
  }
}

</mosaic_0001>

<llo_original>
// kernel: tpu_custom_call.1
$region0: #{tpu_custom_call.1}
  #allocation0 [shape = 'u32[]', space=smem, size = 0x4, offset = 0x4, fixed_abs, tag = 'smem constant byte address 0x4 - core index']
  #allocation1 [shape = 'u32[144,128]{1,0:T(1,128)}', space=vmem, size = 0x12000, scoped, tag = 'internal scratch']
  %s0 = inlined_call_operand.hbm [shape: f32[2,128], index: 0, kind: input, shape index: {}]
  %s1 = inlined_call_operand.hbm [shape: f32[2,128], index: 1, kind: output, shape index: {}]
  %s2 = sld [smem:[#allocation0]]
  $region18: #{tpu_custom_call.1} parent=0
    _
  %s4 = ssub.s32 1, %s2
  %s5 = scalar_select 0, %s4, %s2
  $region1: #{tpu_custom_call.1} parent=0
    #allocation2 [shape = 'u8[1024]{0}', space=vmem, size = 0x400, scoped, tag = 'input window, operand 0, single buffered']
    #allocation3 [shape = 's32[1]{0}', space=sflag, size = 0x4, scoped, tag = 'scoped memory for tpu_custom_call.1']
    #allocation4 [shape = 's32[1]{0}', space=sflag, size = 0x4, scoped, tag = 'scoped memory for tpu_custom_call.1']
    #allocation5 [shape = 'u8[1024]{0}', space=vmem, size = 0x400, scoped, tag = 'output window, operand 0, single buffered']
    %6 = vsyncpa [#allocation3], 0
    %7 = vsyncpa [#allocation4], 0
    // Predicated region
    $region2: #{tpu_custom_call.1} parent=1 // pred_check
      _
    $region3: #{tpu_custom_call.1} parent=1 // pred_check_branch
      %9 = sbr.rel (0) target = $region5
    $region4: #{tpu_custom_call.1} parent=1 // pred_region
      %s11 = ssub.s32 32, 32
      %12 = vsyncadd [#allocation3], %s11
      %s14 = sshll.u32 [#allocation2], 4
      %s15 = int_to_ptr.vmem [resolvable:$true] %s14
      %17 = dma.hbm_to_vmem [thread:$0]  %s0, 32, %s15, [#allocation3]
    $region5: #{tpu_custom_call.1} parent=1 // pred_fallthru
      _
    // Predicated region
    $region6: #{tpu_custom_call.1} parent=1 // pred_check
      _
    $region7: #{tpu_custom_call.1} parent=1 // pred_check_branch
      %19 = sbr.rel (0) target = $region9
    $region8: #{tpu_custom_call.1} parent=1 // pred_region
      %20 = dma.done [#allocation3], 32
    $region9: #{tpu_custom_call.1} parent=1 // pred_fallthru
      _
    %v21 = vld [vmem:[#allocation2] sm:$0x3]
    %22 = vst [vmem:[#allocation5] sm:$0x3] %v21
    // Predicated region
    $region10: #{tpu_custom_call.1} parent=1 // pred_check
      _
    $region11: #{tpu_custom_call.1} parent=1 // pred_check_branch
      %24 = sbr.rel (0) target = $region13
    $region12: #{tpu_custom_call.1} parent=1 // pred_region
      %s26 = ssub.s32 32, 32
      %27 = vsyncadd [#allocation4], %s26
      %s29 = sshll.u32 [#allocation5], 4
      %s30 = int_to_ptr.vmem [resolvable:$true] %s29
      %32 = dma.vmem_to_hbm [thread:$0]  %s30, 32, %s1, [#allocation4]
    $region13: #{tpu_custom_call.1} parent=1 // pred_fallthru
      _
    // Predicated region
    $region14: #{tpu_custom_call.1} parent=1 // pred_check
      _
    $region15: #{tpu_custom_call.1} parent=1 // pred_check_branch
      %34 = sbr.rel (0) target = $region17
    $region16: #{tpu_custom_call.1} parent=1 // pred_region
      %35 = dma.done [#allocation4], 32
    $region17: #{tpu_custom_call.1} parent=1 // pred_fallthru
      _
    %36 = vsyncpa [#allocation3], 1
    %37 = vsyncpa [#allocation4], 1

</llo_original>
